<compile_context>
chip_gen: v5e
topology: v5e:2x2
jax: 0.10.0
libtpu: 0.0.40
codegen_flags: <defaults>
</compile_context>

<pallas_src>
import functools

import jax
import jax.numpy as jnp
from jax import lax
from jax.experimental import pallas as pl
from jax.experimental.pallas import tpu as pltpu


def _loss_kernel(pred_ref, tgt_ref, out_ref, *, lambda_coord, lambda_noobj,
                 n_rows, tile_rows, needs_mask):
    p = pred_ref[...].astype(jnp.float32)   # (TN, D)
    t = tgt_ref[...].astype(jnp.float32)    # (TN, D)
    tn, d = p.shape

    if needs_mask:
        row = (pl.program_id(0) * tile_rows
               + lax.broadcasted_iota(jnp.int32, (tn, 1), 0))      # (TN, 1)
        valid = row < n_rows
        # Sanitize garbage rows of a partial tail tile so no Inf/NaN from
        # stale VMEM can reach the weighted sum (their weights are 0 anyway).
        p = jnp.where(valid, p, 0.0)
        t = jnp.where(valid, t, 0.0)

    # Target confidence: direct column read of lane 4 (no masked lane-reduce).
    t_conf = t[:, 4:5]                       # (TN, 1)
    obj = t_conf == 1.0
    noobj = t_conf == 0.0
    if needs_mask:
        obj = obj & valid
        noobj = noobj & valid
    obj_f = obj.astype(jnp.float32)          # (TN, 1)
    noobj_f = noobj.astype(jnp.float32)      # (TN, 1)

    # Compile-time per-lane weight vectors.
    lane = lax.broadcasted_iota(jnp.int32, (1, d), 1)
    is_box = lane < 4
    w_obj_lane = jnp.where(is_box, jnp.float32(lambda_coord), jnp.float32(1.0))
    w_noobj_lane = jnp.where(lane == 4, jnp.float32(lambda_noobj),
                             jnp.float32(0.0))

    # Elementwise binary cross entropy with logits (stable) and squared error.
    bce = jnp.maximum(p, 0.0) - p * t + jnp.log1p(jnp.exp(-jnp.abs(p)))
    se = (p - t) * (p - t)

    v = jnp.where(is_box, se, bce)                     # (TN, D)
    w = obj_f * w_obj_lane + noobj_f * w_noobj_lane    # (TN, D)
    partial = jnp.sum(w * v)                           # scalar f32

    out_ref[...] = jnp.broadcast_to(partial, out_ref.shape).astype(out_ref.dtype)


def yolov3_loss(predictions, targets, *, lambda_coord=5.0, lambda_noobj=0.5,
                tile_rows=4096):
    """Total YOLOv3 loss (matches the PyTorch module's forward)."""
    d = predictions.shape[-1]
    assert targets.shape[-1] == d

    p2 = predictions.reshape(-1, d)   # free view: leading dims collapse
    t2 = targets.reshape(-1, d)
    n = p2.shape[0]

    # Tile rows: multiple of 8, clamped so small inputs use a single block.
    tile_rows = max(8, (int(tile_rows) // 8) * 8)
    tr = min(tile_rows, pl.cdiv(n, 8) * 8)
    num_blocks = pl.cdiv(n, tr)
    needs_mask = (n % tr) != 0

    kernel = functools.partial(
        _loss_kernel,
        lambda_coord=float(lambda_coord),
        lambda_noobj=float(lambda_noobj),
        n_rows=n, tile_rows=tr, needs_mask=needs_mask)

    partials = pl.pallas_call(
        kernel,
        out_shape=jax.ShapeDtypeStruct((num_blocks, 8, 128), jnp.float32),
        grid_spec=pltpu.PrefetchScalarGridSpec(
            num_scalar_prefetch=0,
            grid=(num_blocks,),
            in_specs=[
                pl.BlockSpec((tr, d), lambda i: (i, 0)),
                pl.BlockSpec((tr, d), lambda i: (i, 0)),
            ],
            out_specs=pl.BlockSpec((1, 8, 128), lambda i: (i, 0, 0)),
        ),
        compiler_params=pltpu.CompilerParams(
            dimension_semantics=("parallel",)),
    )(p2, t2)

    # One partial per block (each block's (8,128) slab holds the same value).
    return jnp.sum(partials[:, 0, 0])


def yolov3_loss_ref(predictions, targets, *, lambda_coord=5.0,
                    lambda_noobj=0.5):
    """Pure-JAX reference matching the PyTorch module semantics."""
    p = predictions.astype(jnp.float32)
    t = targets.astype(jnp.float32)
    obj = t[..., 4] == 1.0
    noobj = t[..., 4] == 0.0

    def bce(x, z):
        return jnp.maximum(x, 0.0) - x * z + jnp.log1p(jnp.exp(-jnp.abs(x)))

    conf_loss_obj = jnp.sum(jnp.where(obj, bce(p[..., 4], t[..., 4]), 0.0))
    conf_loss_noobj = jnp.sum(jnp.where(noobj, bce(p[..., 4], t[..., 4]), 0.0))
    cls_loss = jnp.sum(jnp.where(obj[..., None],
                                 bce(p[..., 5:], t[..., 5:]), 0.0))
    coord_loss = jnp.sum(jnp.where(obj[..., None],
                                   (p[..., :4] - t[..., :4]) ** 2, 0.0))
    return (lambda_coord * coord_loss + conf_loss_obj
            + lambda_noobj * conf_loss_noobj + cls_loss)


if __name__ == "__main__":
    # Module config (deterministic, in-script; anchors only set num_anchors)
    num_classes = 20
    anchors = [(10, 13), (16, 30), (33, 23)]
    num_anchors = len(anchors)

    # Small shapes: batch=2, anchors=3, grid=4x4, features = 5 + 20 = 25
    B, A, G = 2, num_anchors, 4
    D = 5 + num_classes

    key = jax.random.PRNGKey(0)
    k_pred, k_box, k_cls, k_conf = jax.random.split(key, 4)

    predictions = jax.random.normal(k_pred, (B, A, G, G, D), dtype=jnp.float32)

    # Targets: boxes in [0,1), conf in {0,1}, one-hot-ish class targets
    t_box = jax.random.uniform(k_box, (B, A, G, G, 4), dtype=jnp.float32)
    t_conf = (jax.random.uniform(k_conf, (B, A, G, G, 1)) > 0.7).astype(jnp.float32)
    t_cls = (jax.random.uniform(k_cls, (B, A, G, G, num_classes)) > 0.9
             ).astype(jnp.float32)
    targets = jnp.concatenate([t_box, t_conf, t_cls], axis=-1)

    ref = yolov3_loss_ref(predictions, targets,
                          lambda_coord=5.0, lambda_noobj=0.5)

    # Single-block path (default large tile clamps to the full 96 rows).
    loss = yolov3_loss(predictions, targets,
                       lambda_coord=5.0, lambda_noobj=0.5)
    loss = jax.block_until_ready(loss)
    assert jnp.allclose(loss, ref, rtol=1e-5, atol=1e-4), (loss, ref)

    # Multi-block + ragged-tail-mask path (96 rows, 64-row tiles -> 2 blocks,
    # second block is partial and masked in-kernel).
    loss2 = yolov3_loss(predictions, targets,
                        lambda_coord=5.0, lambda_noobj=0.5, tile_rows=64)
    loss2 = jax.block_until_ready(loss2)
    assert jnp.allclose(loss2, ref, rtol=1e-5, atol=1e-4), (loss2, ref)

    print("KERNEL_OK")
</pallas_src>

<mosaic_0001>
module attributes {stable_mosaic.version = 11 : i64} {
  func.func @_loss_kernel(%arg0: i32, %arg1: memref<96x25xf32, #tpu.memory_space<vmem>>, %arg2: memref<96x25xf32, #tpu.memory_space<vmem>>, %arg3: memref<1x8x128xf32, #tpu.memory_space<vmem>>) attributes {dimension_semantics = [#tpu.dimension_semantics<parallel>], iteration_bounds = array<i64: 1>, scalar_prefetch = 0 : i64, scratch_operands = 0 : i64, tpu.core_type = #tpu.core_type<tc>, window_params = [{transform_indices = @transform_0, window_bounds = array<i64: 96, 25>}, {transform_indices = @transform_1, window_bounds = array<i64: 96, 25>}, {transform_indices = @transform_2, window_bounds = array<i64: 1, 8, 128>}]} {
    %c0 = arith.constant 0 : index
    %c0_0 = arith.constant 0 : index
    %0 = vector.load %arg1[%c0, %c0_0] : memref<96x25xf32, #tpu.memory_space<vmem>>, vector<96x25xf32>
    %c0_1 = arith.constant 0 : index
    %c0_2 = arith.constant 0 : index
    %1 = vector.load %arg2[%c0_1, %c0_2] : memref<96x25xf32, #tpu.memory_space<vmem>>, vector<96x25xf32>
    %2 = vector.extract_strided_slice %1 {offsets = [0, 4], sizes = [96, 1], strides = [1, 1]} : vector<96x25xf32> to vector<96x1xf32>
    %cst = arith.constant 1.000000e+00 : f32
    %3 = vector.broadcast %cst : f32 to vector<96x1xf32>
    %4 = arith.cmpf oeq, %2, %3 : vector<96x1xf32>
    %cst_3 = arith.constant 0.000000e+00 : f32
    %5 = vector.broadcast %cst_3 : f32 to vector<96x1xf32>
    %6 = arith.cmpf oeq, %2, %5 : vector<96x1xf32>
    %7 = arith.extui %4 : vector<96x1xi1> to vector<96x1xi32>
    %8 = arith.sitofp %7 : vector<96x1xi32> to vector<96x1xf32>
    %9 = arith.extui %6 : vector<96x1xi1> to vector<96x1xi32>
    %10 = arith.sitofp %9 : vector<96x1xi32> to vector<96x1xf32>
    %11 = tpu.iota {dimensions = array<i32: 1>} : vector<1x25xi32>
    %c4_i32 = arith.constant 4 : i32
    %12 = vector.broadcast %c4_i32 : i32 to vector<1x25xi32>
    %13 = arith.cmpi slt, %11, %12 : vector<1x25xi32>
    %cst_4 = arith.constant 5.000000e+00 : f32
    %cst_5 = arith.constant 1.000000e+00 : f32
    %14 = vector.broadcast %cst_4 : f32 to vector<1x25xf32>
    %15 = vector.broadcast %cst_5 : f32 to vector<1x25xf32>
    %16 = arith.select %13, %14, %15 : vector<1x25xi1>, vector<1x25xf32>
    %c4_i32_6 = arith.constant 4 : i32
    %17 = vector.broadcast %c4_i32_6 : i32 to vector<1x25xi32>
    %18 = arith.cmpi eq, %11, %17 : vector<1x25xi32>
    %cst_7 = arith.constant 5.000000e-01 : f32
    %cst_8 = arith.constant 0.000000e+00 : f32
    %19 = vector.broadcast %cst_7 : f32 to vector<1x25xf32>
    %20 = vector.broadcast %cst_8 : f32 to vector<1x25xf32>
    %21 = arith.select %18, %19, %20 : vector<1x25xi1>, vector<1x25xf32>
    %cst_9 = arith.constant 0.000000e+00 : f32
    %22 = vector.broadcast %cst_9 : f32 to vector<96x25xf32>
    %23 = arith.maximumf %0, %22 : vector<96x25xf32>
    %24 = arith.mulf %0, %1 : vector<96x25xf32>
    %25 = arith.subf %23, %24 : vector<96x25xf32>
    %26 = math.absf %0 : vector<96x25xf32>
    %cst_10 = arith.constant 0.000000e+00 : f32
    %27 = vector.broadcast %cst_10 : f32 to vector<96x25xf32>
    %28 = arith.subf %27, %26 : vector<96x25xf32>
    %29 = math.exp %28 : vector<96x25xf32>
    %30 = math.log1p %29 : vector<96x25xf32>
    %31 = arith.addf %25, %30 : vector<96x25xf32>
    %32 = arith.subf %0, %1 : vector<96x25xf32>
    %33 = arith.subf %0, %1 : vector<96x25xf32>
    %34 = arith.mulf %32, %33 : vector<96x25xf32>
    %35 = vector.shape_cast %13 : vector<1x25xi1> to vector<1x25xi1>
    %36 = vector.broadcast %35 : vector<1x25xi1> to vector<96x25xi1>
    %37 = arith.select %36, %34, %31 : vector<96x25xi1>, vector<96x25xf32>
    %38 = vector.broadcast %8 : vector<96x1xf32> to vector<96x25xf32>
    %39 = vector.broadcast %16 : vector<1x25xf32> to vector<96x25xf32>
    %40 = arith.mulf %38, %39 : vector<96x25xf32>
    %41 = vector.broadcast %10 : vector<96x1xf32> to vector<96x25xf32>
    %42 = vector.broadcast %21 : vector<1x25xf32> to vector<96x25xf32>
    %43 = arith.mulf %41, %42 : vector<96x25xf32>
    %44 = arith.addf %40, %43 : vector<96x25xf32>
    %45 = arith.mulf %44, %37 : vector<96x25xf32>
    %46 = vector.shape_cast %45 : vector<96x25xf32> to vector<1x96x25xf32>
    %cst_11 = arith.constant dense<0.000000e+00> : vector<1xf32>
    %47 = vector.multi_reduction <add>, %46, %cst_11 [1, 2] : vector<1x96x25xf32> to vector<1xf32>
    %48 = vector.shape_cast %47 : vector<1xf32> to vector<1x1x1xf32>
    %49 = vector.extract %48[0, 0, 0] : f32 from vector<1x1x1xf32>
    %50 = vector.broadcast %49 : f32 to vector<1x8x128xf32>
    %c0_12 = arith.constant 0 : index
    %c0_13 = arith.constant 0 : index
    %c0_14 = arith.constant 0 : index
    %51 = vector.load %arg3[%c0_12, %c0_13, %c0_14] : memref<1x8x128xf32, #tpu.memory_space<vmem>>, vector<1x8x128xf32>
    tpu.vector_store %arg3[%c0_12, %c0_13, %c0_14], %50 {strides = array<i32>} : memref<1x8x128xf32, #tpu.memory_space<vmem>>, vector<1x8x128xf32>,
    return
  }
  func.func @transform_0(%arg0: i32) -> (i32, i32) {
    %c0_i32 = arith.constant 0 : i32
    %c0_i32_0 = arith.constant 0 : i32
    return %arg0, %c0_i32 : i32, i32
  }
  func.func @transform_1(%arg0: i32) -> (i32, i32) {
    %c0_i32 = arith.constant 0 : i32
    %c0_i32_0 = arith.constant 0 : i32
    return %arg0, %c0_i32 : i32, i32
  }
  func.func @transform_2(%arg0: i32) -> (i32, i32, i32) {
    %c0_i32 = arith.constant 0 : i32
    %c0_i32_0 = arith.constant 0 : i32
    %c0_i32_1 = arith.constant 0 : i32
    return %arg0, %c0_i32, %c0_i32_0 : i32, i32, i32
  }
}

</mosaic_0001>

<llo_original>
// kernel: tpu_custom_call.1
$region0: #{tpu_custom_call.1}
  #allocation0 [shape = 'u32[]', space=smem, size = 0x4, offset = 0x4, fixed_abs, tag = 'smem constant byte address 0x4 - core index']
  #allocation1 [shape = 'u32[72,128]{1,0:T(1,128)}', space=vmem, size = 0x9000, scoped, tag = 'internal scratch']
  %s0 = inlined_call_operand.vmem [shape: f32[96,25], index: 0, kind: input, shape index: {}]
  %s1 = inlined_call_operand.vmem [shape: f32[96,25], index: 1, kind: input, shape index: {}]
  %s2 = inlined_call_operand.hbm [shape: f32[1,8,128], index: 2, kind: output, shape index: {}]
  %s3 = sld [smem:[#allocation0]]
  $region18: #{tpu_custom_call.1} parent=0
    _
  %s5 = ssub.s32 1, %s3
  %s6 = scalar_select 0, %s5, %s3
  $region1: #{tpu_custom_call.1} parent=0
    #allocation2 [shape = 'u8[4096]{0}', space=vmem, size = 0x1000, scoped, tag = 'output window, operand 0, single buffered']
    #allocation3 [shape = 's32[1]{0}', space=sflag, size = 0x4, scoped, tag = 'scoped memory for tpu_custom_call.1']
    %7 = vsyncpa [#allocation3], 0
    // Predicated region
    $region2: #{tpu_custom_call.1} parent=1 // pred_check
      _
    $region3: #{tpu_custom_call.1} parent=1 // pred_check_branch
      %9 = sbr.rel (0) target = $region5
    $region4: #{tpu_custom_call.1} parent=1 // pred_region
      _
    $region5: #{tpu_custom_call.1} parent=1 // pred_fallthru
      _
    // Predicated region
    $region6: #{tpu_custom_call.1} parent=1 // pred_check
      _
    $region7: #{tpu_custom_call.1} parent=1 // pred_check_branch
      %11 = sbr.rel (0) target = $region9
    $region8: #{tpu_custom_call.1} parent=1 // pred_region
      _
    $region9: #{tpu_custom_call.1} parent=1 // pred_fallthru
      _
    %v12 = vld [vmem:[%s0] sm:$0xff]
    %v13 = vld [vmem:[%s0 + $0x8] sm:$0xff]
    %v14 = vld [vmem:[%s0 + $0x10] sm:$0xff]
    %v15 = vld [vmem:[%s0 + $0x18] sm:$0xff]
    %v16 = vld [vmem:[%s0 + $0x20] sm:$0xff]
    %v17 = vld [vmem:[%s0 + $0x28] sm:$0xff]
    %v18 = vld [vmem:[%s0 + $0x30] sm:$0xff]
    %v19 = vld [vmem:[%s0 + $0x38] sm:$0xff]
    %v20 = vld [vmem:[%s0 + $0x40] sm:$0xff]
    %v21 = vld [vmem:[%s0 + $0x48] sm:$0xff]
    %v22 = vld [vmem:[%s0 + $0x50] sm:$0xff]
    %v23 = vld [vmem:[%s0 + $0x58] sm:$0xff]
    %v24 = vld [vmem:[%s1] sm:$0xff]
    %v25 = vld [vmem:[%s1 + $0x8] sm:$0xff]
    %v26 = vld [vmem:[%s1 + $0x10] sm:$0xff]
    %v27 = vld [vmem:[%s1 + $0x18] sm:$0xff]
    %v28 = vld [vmem:[%s1 + $0x20] sm:$0xff]
    %v29 = vld [vmem:[%s1 + $0x28] sm:$0xff]
    %v30 = vld [vmem:[%s1 + $0x30] sm:$0xff]
    %v31 = vld [vmem:[%s1 + $0x38] sm:$0xff]
    %v32 = vld [vmem:[%s1 + $0x40] sm:$0xff]
    %v33 = vld [vmem:[%s1 + $0x48] sm:$0xff]
    %v34 = vld [vmem:[%s1 + $0x50] sm:$0xff]
    %v35 = vld [vmem:[%s1 + $0x58] sm:$0xff]
    %vm36 = vcmp.eq.f32.partialorder %v24, 1.0
    %vm37 = vcmp.eq.f32.partialorder %v25, 1.0
    %vm38 = vcmp.eq.f32.partialorder %v26, 1.0
    %vm39 = vcmp.eq.f32.partialorder %v27, 1.0
    %vm40 = vcmp.eq.f32.partialorder %v28, 1.0
    %vm41 = vcmp.eq.f32.partialorder %v29, 1.0
    %vm42 = vcmp.eq.f32.partialorder %v30, 1.0
    %vm43 = vcmp.eq.f32.partialorder %v31, 1.0
    %vm44 = vcmp.eq.f32.partialorder %v32, 1.0
    %vm45 = vcmp.eq.f32.partialorder %v33, 1.0
    %vm46 = vcmp.eq.f32.partialorder %v34, 1.0
    %vm47 = vcmp.eq.f32.partialorder %v35, 1.0
    %vm48 = vcmp.eq.f32.partialorder %v24, 0.0
    %vm49 = vcmp.eq.f32.partialorder %v25, 0.0
    %vm50 = vcmp.eq.f32.partialorder %v26, 0.0
    %vm51 = vcmp.eq.f32.partialorder %v27, 0.0
    %vm52 = vcmp.eq.f32.partialorder %v28, 0.0
    %vm53 = vcmp.eq.f32.partialorder %v29, 0.0
    %vm54 = vcmp.eq.f32.partialorder %v30, 0.0
    %vm55 = vcmp.eq.f32.partialorder %v31, 0.0
    %vm56 = vcmp.eq.f32.partialorder %v32, 0.0
    %vm57 = vcmp.eq.f32.partialorder %v33, 0.0
    %vm58 = vcmp.eq.f32.partialorder %v34, 0.0
    %vm59 = vcmp.eq.f32.partialorder %v35, 0.0
    %v60 = vsel %vm36, 1, 0
    %v61 = vsel %vm37, 1, 0
    %v62 = vsel %vm38, 1, 0
    %v63 = vsel %vm39, 1, 0
    %v64 = vsel %vm40, 1, 0
    %v65 = vsel %vm41, 1, 0
    %v66 = vsel %vm42, 1, 0
    %v67 = vsel %vm43, 1, 0
    %v68 = vsel %vm44, 1, 0
    %v69 = vsel %vm45, 1, 0
    %v70 = vsel %vm46, 1, 0
    %v71 = vsel %vm47, 1, 0
    %v72 = vcvt.s32.f32 %v60
    %v73 = vcvt.s32.f32 %v61
    %v74 = vcvt.s32.f32 %v62
    %v75 = vcvt.s32.f32 %v63
    %v76 = vcvt.s32.f32 %v64
    %v77 = vcvt.s32.f32 %v65
    %v78 = vcvt.s32.f32 %v66
    %v79 = vcvt.s32.f32 %v67
    %v80 = vcvt.s32.f32 %v68
    %v81 = vcvt.s32.f32 %v69
    %v82 = vcvt.s32.f32 %v70
    %v83 = vcvt.s32.f32 %v71
    %v84 = vsel %vm48, 1, 0
    %v85 = vsel %vm49, 1, 0
    %v86 = vsel %vm50, 1, 0
    %v87 = vsel %vm51, 1, 0
    %v88 = vsel %vm52, 1, 0
    %v89 = vsel %vm53, 1, 0
    %v90 = vsel %vm54, 1, 0
    %v91 = vsel %vm55, 1, 0
    %v92 = vsel %vm56, 1, 0
    %v93 = vsel %vm57, 1, 0
    %v94 = vsel %vm58, 1, 0
    %v95 = vsel %vm59, 1, 0
    %v96 = vcvt.s32.f32 %v84
    %v97 = vcvt.s32.f32 %v85
    %v98 = vcvt.s32.f32 %v86
    %v99 = vcvt.s32.f32 %v87
    %v100 = vcvt.s32.f32 %v88
    %v101 = vcvt.s32.f32 %v89
    %v102 = vcvt.s32.f32 %v90
    %v103 = vcvt.s32.f32 %v91
    %v104 = vcvt.s32.f32 %v92
    %v105 = vcvt.s32.f32 %v93
    %v106 = vcvt.s32.f32 %v94
    %v107 = vcvt.s32.f32 %v95
    %v108 = vlaneseq
    %v109 = vand.u32 %v108, 127
    %vm110 = vcmp.lt.s32.totalorder %v109, 4
    %v111 = vsel %vm110, 5.0, 1.0
    %vm112 = vcmp.eq.s32.totalorder %v109, 4
    %v113 = vsel %vm112, 0.5, 0.0
    %v114 = vmax.f32 %v12, 0.0
    %v115 = vmax.f32 %v13, 0.0
    %v116 = vmax.f32 %v14, 0.0
    %v117 = vmax.f32 %v15, 0.0
    %v118 = vmax.f32 %v16, 0.0
    %v119 = vmax.f32 %v17, 0.0
    %v120 = vmax.f32 %v18, 0.0
    %v121 = vmax.f32 %v19, 0.0
    %v122 = vmax.f32 %v20, 0.0
    %v123 = vmax.f32 %v21, 0.0
    %v124 = vmax.f32 %v22, 0.0
    %v125 = vmax.f32 %v23, 0.0
    %v126 = vmul.f32 %v12, %v24
    %v127 = vmul.f32 %v13, %v25
    %v128 = vmul.f32 %v14, %v26
    %v129 = vmul.f32 %v15, %v27
    %v130 = vmul.f32 %v16, %v28
    %v131 = vmul.f32 %v17, %v29
    %v132 = vmul.f32 %v18, %v30
    %v133 = vmul.f32 %v19, %v31
    %v134 = vmul.f32 %v20, %v32
    %v135 = vmul.f32 %v21, %v33
    %v136 = vmul.f32 %v22, %v34
    %v137 = vmul.f32 %v23, %v35
    %v138 = vsub.f32 %v114, %v126
    %v139 = vsub.f32 %v115, %v127
    %v140 = vsub.f32 %v116, %v128
    %v141 = vsub.f32 %v117, %v129
    %v142 = vsub.f32 %v118, %v130
    %v143 = vsub.f32 %v119, %v131
    %v144 = vsub.f32 %v120, %v132
    %v145 = vsub.f32 %v121, %v133
    %v146 = vsub.f32 %v122, %v134
    %v147 = vsub.f32 %v123, %v135
    %v148 = vsub.f32 %v124, %v136
    %v149 = vsub.f32 %v125, %v137
    %v150 = vand.u32 2147483647, %v12
    %v151 = vand.u32 2147483647, %v13
    %v152 = vand.u32 2147483647, %v14
    %v153 = vand.u32 2147483647, %v15
    %v154 = vand.u32 2147483647, %v16
    %v155 = vand.u32 2147483647, %v17
    %v156 = vand.u32 2147483647, %v18
    %v157 = vand.u32 2147483647, %v19
    %v158 = vand.u32 2147483647, %v20
    %v159 = vand.u32 2147483647, %v21
    %v160 = vand.u32 2147483647, %v22
    %v161 = vand.u32 2147483647, %v23
    %v162 = vsub.f32 0.0, %v150
    %v163 = vsub.f32 0.0, %v151
    %v164 = vsub.f32 0.0, %v152
    %v165 = vsub.f32 0.0, %v153
    %v166 = vsub.f32 0.0, %v154
    %v167 = vsub.f32 0.0, %v155
    %v168 = vsub.f32 0.0, %v156
    %v169 = vsub.f32 0.0, %v157
    %v170 = vsub.f32 0.0, %v158
    %v171 = vsub.f32 0.0, %v159
    %v172 = vsub.f32 0.0, %v160
    %v173 = vsub.f32 0.0, %v161
    %v174 = vmul.f32 %v162, 1.442695
    %v175 = vpow.pop %v174
    %v176 = vmul.f32 %v163, 1.442695
    %v177 = vpow.pop %v176
    %v178 = vmul.f32 %v164, 1.442695
    %v179 = vpow.pop %v178
    %v180 = vmul.f32 %v165, 1.442695
    %v181 = vpow.pop %v180
    %v182 = vmul.f32 %v166, 1.442695
    %v183 = vpow.pop %v182
    %v184 = vmul.f32 %v167, 1.442695
    %v185 = vpow.pop %v184
    %v186 = vmul.f32 %v168, 1.442695
    %v187 = vpow.pop %v186
    %v188 = vmul.f32 %v169, 1.442695
    %v189 = vpow.pop %v188
    %v190 = vmul.f32 %v170, 1.442695
    %v191 = vpow.pop %v190
    %v192 = vmul.f32 %v171, 1.442695
    %v193 = vpow.pop %v192
    %v194 = vmul.f32 %v172, 1.442695
    %v195 = vpow.pop %v194
    %v196 = vmul.f32 %v173, 1.442695
    %v197 = vpow.pop %v196
    %v198 = vadd.f32 %v175, 1.0
    %v199 = vlog2.pop %v198
    %v200 = vmul.f32 %v199, 0.6931472
    %v201 = vmul.f32 -0.5, %v175
    %v202 = vadd.f32 %v201, 1.0
    %v203 = vmul.f32 %v202, %v175
    %v204 = vand.u32 2147483647, %v175
    %vm205 = vcmp.lt.f32.partialorder %v204, 0.0004427343
    %v206 = vsel %vm205, %v203, %v200
    %v207 = vadd.f32 %v177, 1.0
    %v208 = vlog2.pop %v207
    %v209 = vmul.f32 %v208, 0.6931472
    %v210 = vmul.f32 -0.5, %v177
    %v211 = vadd.f32 %v210, 1.0
    %v212 = vmul.f32 %v211, %v177
    %v213 = vand.u32 2147483647, %v177
    %vm214 = vcmp.lt.f32.partialorder %v213, 0.0004427343
    %v215 = vsel %vm214, %v212, %v209
    %v216 = vadd.f32 %v179, 1.0
    %v217 = vlog2.pop %v216
    %v218 = vmul.f32 %v217, 0.6931472
    %v219 = vmul.f32 -0.5, %v179
    %v220 = vadd.f32 %v219, 1.0
    %v221 = vmul.f32 %v220, %v179
    %v222 = vand.u32 2147483647, %v179
    %vm223 = vcmp.lt.f32.partialorder %v222, 0.0004427343
    %v224 = vsel %vm223, %v221, %v218
    %v225 = vadd.f32 %v181, 1.0
    %v226 = vlog2.pop %v225
    %v227 = vmul.f32 %v226, 0.6931472
    %v228 = vmul.f32 -0.5, %v181
    %v229 = vadd.f32 %v228, 1.0
    %v230 = vmul.f32 %v229, %v181
    %v231 = vand.u32 2147483647, %v181
    %vm232 = vcmp.lt.f32.partialorder %v231, 0.0004427343
    %v233 = vsel %vm232, %v230, %v227
    %v234 = vadd.f32 %v183, 1.0
    %v235 = vlog2.pop %v234
    %v236 = vmul.f32 %v235, 0.6931472
    %v237 = vmul.f32 -0.5, %v183
    %v238 = vadd.f32 %v237, 1.0
    %v239 = vmul.f32 %v238, %v183
    %v240 = vand.u32 2147483647, %v183
    %vm241 = vcmp.lt.f32.partialorder %v240, 0.0004427343
    %v242 = vsel %vm241, %v239, %v236
    %v243 = vadd.f32 %v185, 1.0
    %v244 = vlog2.pop %v243
    %v245 = vmul.f32 %v244, 0.6931472
    %v246 = vmul.f32 -0.5, %v185
    %v247 = vadd.f32 %v246, 1.0
    %v248 = vmul.f32 %v247, %v185
    %v249 = vand.u32 2147483647, %v185
    %vm250 = vcmp.lt.f32.partialorder %v249, 0.0004427343
    %v251 = vsel %vm250, %v248, %v245
    %v252 = vadd.f32 %v187, 1.0
    %v253 = vlog2.pop %v252
    %v254 = vmul.f32 %v253, 0.6931472
    %v255 = vmul.f32 -0.5, %v187
    %v256 = vadd.f32 %v255, 1.0
    %v257 = vmul.f32 %v256, %v187
    %v258 = vand.u32 2147483647, %v187
    %vm259 = vcmp.lt.f32.partialorder %v258, 0.0004427343
    %v260 = vsel %vm259, %v257, %v254
    %v261 = vadd.f32 %v189, 1.0
    %v262 = vlog2.pop %v261
    %v263 = vmul.f32 %v262, 0.6931472
    %v264 = vmul.f32 -0.5, %v189
    %v265 = vadd.f32 %v264, 1.0
    %v266 = vmul.f32 %v265, %v189
    %v267 = vand.u32 2147483647, %v189
    %vm268 = vcmp.lt.f32.partialorder %v267, 0.0004427343
    %v269 = vsel %vm268, %v266, %v263
    %v270 = vadd.f32 %v191, 1.0
    %v271 = vlog2.pop %v270
    %v272 = vmul.f32 %v271, 0.6931472
    %v273 = vmul.f32 -0.5, %v191
    %v274 = vadd.f32 %v273, 1.0
    %v275 = vmul.f32 %v274, %v191
    %v276 = vand.u32 2147483647, %v191
    %vm277 = vcmp.lt.f32.partialorder %v276, 0.0004427343
    %v278 = vsel %vm277, %v275, %v272
    %v279 = vadd.f32 %v193, 1.0
    %v280 = vlog2.pop %v279
    %v281 = vmul.f32 %v280, 0.6931472
    %v282 = vmul.f32 -0.5, %v193
    %v283 = vadd.f32 %v282, 1.0
    %v284 = vmul.f32 %v283, %v193
    %v285 = vand.u32 2147483647, %v193
    %vm286 = vcmp.lt.f32.partialorder %v285, 0.0004427343
    %v287 = vsel %vm286, %v284, %v281
    %v288 = vadd.f32 %v195, 1.0
    %v289 = vlog2.pop %v288
    %v290 = vmul.f32 %v289, 0.6931472
    %v291 = vmul.f32 -0.5, %v195
    %v292 = vadd.f32 %v291, 1.0
    %v293 = vmul.f32 %v292, %v195
    %v294 = vand.u32 2147483647, %v195
    %vm295 = vcmp.lt.f32.partialorder %v294, 0.0004427343
    %v296 = vsel %vm295, %v293, %v290
    %v297 = vadd.f32 %v197, 1.0
    %v298 = vlog2.pop %v297
    %v299 = vmul.f32 %v298, 0.6931472
    %v300 = vmul.f32 -0.5, %v197
    %v301 = vadd.f32 %v300, 1.0
    %v302 = vmul.f32 %v301, %v197
    %v303 = vand.u32 2147483647, %v197
    %vm304 = vcmp.lt.f32.partialorder %v303, 0.0004427343
    %v305 = vsel %vm304, %v302, %v299
    %v306 = vadd.f32 %v138, %v206
    %v307 = vadd.f32 %v139, %v215
    %v308 = vadd.f32 %v140, %v224
    %v309 = vadd.f32 %v141, %v233
    %v310 = vadd.f32 %v142, %v242
    %v311 = vadd.f32 %v143, %v251
    %v312 = vadd.f32 %v144, %v260
    %v313 = vadd.f32 %v145, %v269
    %v314 = vadd.f32 %v146, %v278
    %v315 = vadd.f32 %v147, %v287
    %v316 = vadd.f32 %v148, %v296
    %v317 = vadd.f32 %v149, %v305
    %v318 = vsub.f32 %v12, %v24
    %v319 = vsub.f32 %v13, %v25
    %v320 = vsub.f32 %v14, %v26
    %v321 = vsub.f32 %v15, %v27
    %v322 = vsub.f32 %v16, %v28
    %v323 = vsub.f32 %v17, %v29
    %v324 = vsub.f32 %v18, %v30
    %v325 = vsub.f32 %v19, %v31
    %v326 = vsub.f32 %v20, %v32
    %v327 = vsub.f32 %v21, %v33
    %v328 = vsub.f32 %v22, %v34
    %v329 = vsub.f32 %v23, %v35
    %v330 = vmul.f32 %v318, %v318
    %v331 = vmul.f32 %v319, %v319
    %v332 = vmul.f32 %v320, %v320
    %v333 = vmul.f32 %v321, %v321
    %v334 = vmul.f32 %v322, %v322
    %v335 = vmul.f32 %v323, %v323
    %v336 = vmul.f32 %v324, %v324
    %v337 = vmul.f32 %v325, %v325
    %v338 = vmul.f32 %v326, %v326
    %v339 = vmul.f32 %v327, %v327
    %v340 = vmul.f32 %v328, %v328
    %v341 = vmul.f32 %v329, %v329
    %v342 = vsel %vm110, 1, 0
    %vm343 = vcmp.eq.s32.totalorder %v342, 1
    %v344 = vsel %vm343, %v330, %v306
    %v345 = vsel %vm343, %v331, %v307
    %v346 = vsel %vm343, %v332, %v308
    %v347 = vsel %vm343, %v333, %v309
    %v348 = vsel %vm343, %v334, %v310
    %v349 = vsel %vm343, %v335, %v311
    %v350 = vsel %vm343, %v336, %v312
    %v351 = vsel %vm343, %v337, %v313
    %v352 = vsel %vm343, %v338, %v314
    %v353 = vsel %vm343, %v339, %v315
    %v354 = vsel %vm343, %v340, %v316
    %v355 = vsel %vm343, %v341, %v317
    %357 = vset.pattern.permute.xlu0 4
    %358 = vperm.xlu0 %357, %v72
    %v359 = vpop.permute.xlu0 %358
    %362 = vset.pattern.permute.xlu0 4
    %363 = vperm.xlu0 %362, %v73
    %v364 = vpop.permute.xlu0 %363
    %367 = vset.pattern.permute.xlu0 4
    %368 = vperm.xlu0 %367, %v74
    %v369 = vpop.permute.xlu0 %368
    %372 = vset.pattern.permute.xlu0 4
    %373 = vperm.xlu0 %372, %v75
    %v374 = vpop.permute.xlu0 %373
    %377 = vset.pattern.permute.xlu0 4
    %378 = vperm.xlu0 %377, %v76
    %v379 = vpop.permute.xlu0 %378
    %382 = vset.pattern.permute.xlu0 4
    %383 = vperm.xlu0 %382, %v77
    %v384 = vpop.permute.xlu0 %383
    %387 = vset.pattern.permute.xlu0 4
    %388 = vperm.xlu0 %387, %v78
    %v389 = vpop.permute.xlu0 %388
    %392 = vset.pattern.permute.xlu0 4
    %393 = vperm.xlu0 %392, %v79
    %v394 = vpop.permute.xlu0 %393
    %397 = vset.pattern.permute.xlu0 4
    %398 = vperm.xlu0 %397, %v80
    %v399 = vpop.permute.xlu0 %398
    %402 = vset.pattern.permute.xlu0 4
    %403 = vperm.xlu0 %402, %v81
    %v404 = vpop.permute.xlu0 %403
    %407 = vset.pattern.permute.xlu0 4
    %408 = vperm.xlu0 %407, %v82
    %v409 = vpop.permute.xlu0 %408
    %412 = vset.pattern.permute.xlu0 4
    %413 = vperm.xlu0 %412, %v83
    %v414 = vpop.permute.xlu0 %413
    %v416 = vmul.f32 %v359, %v111
    %v417 = vmul.f32 %v364, %v111
    %v418 = vmul.f32 %v369, %v111
    %v419 = vmul.f32 %v374, %v111
    %v420 = vmul.f32 %v379, %v111
    %v421 = vmul.f32 %v384, %v111
    %v422 = vmul.f32 %v389, %v111
    %v423 = vmul.f32 %v394, %v111
    %v424 = vmul.f32 %v399, %v111
    %v425 = vmul.f32 %v404, %v111
    %v426 = vmul.f32 %v409, %v111
    %v427 = vmul.f32 %v414, %v111
    %429 = vset.pattern.permute.xlu0 4
    %430 = vperm.xlu0 %429, %v96
    %v431 = vpop.permute.xlu0 %430
    %434 = vset.pattern.permute.xlu0 4
    %435 = vperm.xlu0 %434, %v97
    %v436 = vpop.permute.xlu0 %435
    %439 = vset.pattern.permute.xlu0 4
    %440 = vperm.xlu0 %439, %v98
    %v441 = vpop.permute.xlu0 %440
    %444 = vset.pattern.permute.xlu0 4
    %445 = vperm.xlu0 %444, %v99
    %v446 = vpop.permute.xlu0 %445
    %449 = vset.pattern.permute.xlu0 4
    %450 = vperm.xlu0 %449, %v100
    %v451 = vpop.permute.xlu0 %450
    %454 = vset.pattern.permute.xlu0 4
    %455 = vperm.xlu0 %454, %v101
    %v456 = vpop.permute.xlu0 %455
    %459 = vset.pattern.permute.xlu0 4
    %460 = vperm.xlu0 %459, %v102
    %v461 = vpop.permute.xlu0 %460
    %464 = vset.pattern.permute.xlu0 4
    %465 = vperm.xlu0 %464, %v103
    %v466 = vpop.permute.xlu0 %465
    %469 = vset.pattern.permute.xlu0 4
    %470 = vperm.xlu0 %469, %v104
    %v471 = vpop.permute.xlu0 %470
    %474 = vset.pattern.permute.xlu0 4
    %475 = vperm.xlu0 %474, %v105
    %v476 = vpop.permute.xlu0 %475
    %479 = vset.pattern.permute.xlu0 4
    %480 = vperm.xlu0 %479, %v106
    %v481 = vpop.permute.xlu0 %480
    %484 = vset.pattern.permute.xlu0 4
    %485 = vperm.xlu0 %484, %v107
    %v486 = vpop.permute.xlu0 %485
    %v488 = vmul.f32 %v431, %v113
    %v489 = vmul.f32 %v436, %v113
    %v490 = vmul.f32 %v441, %v113
    %v491 = vmul.f32 %v446, %v113
    %v492 = vmul.f32 %v451, %v113
    %v493 = vmul.f32 %v456, %v113
    %v494 = vmul.f32 %v461, %v113
    %v495 = vmul.f32 %v466, %v113
    %v496 = vmul.f32 %v471, %v113
    %v497 = vmul.f32 %v476, %v113
    %v498 = vmul.f32 %v481, %v113
    %v499 = vmul.f32 %v486, %v113
    %v500 = vadd.f32 %v416, %v488
    %v501 = vadd.f32 %v417, %v489
    %v502 = vadd.f32 %v418, %v490
    %v503 = vadd.f32 %v419, %v491
    %v504 = vadd.f32 %v420, %v492
    %v505 = vadd.f32 %v421, %v493
    %v506 = vadd.f32 %v422, %v494
    %v507 = vadd.f32 %v423, %v495
    %v508 = vadd.f32 %v424, %v496
    %v509 = vadd.f32 %v425, %v497
    %v510 = vadd.f32 %v426, %v498
    %v511 = vadd.f32 %v427, %v499
    %v512 = vmul.f32 %v500, %v344
    %v513 = vmul.f32 %v501, %v345
    %v514 = vmul.f32 %v502, %v346
    %v515 = vmul.f32 %v503, %v347
    %v516 = vmul.f32 %v504, %v348
    %v517 = vmul.f32 %v505, %v349
    %v518 = vmul.f32 %v506, %v350
    %v519 = vmul.f32 %v507, %v351
    %v520 = vmul.f32 %v508, %v352
    %v521 = vmul.f32 %v509, %v353
    %v522 = vmul.f32 %v510, %v354
    %v523 = vmul.f32 %v511, %v355
    %vm524 = vcmask 203776
    %v525 = vsel %vm524, %v512, 0.0
    %v526 = vsel %vm524, %v513, 0.0
    %v527 = vadd.f32 %v525, %v526
    %v528 = vsel %vm524, %v514, 0.0
    %v529 = vadd.f32 %v527, %v528
    %v530 = vsel %vm524, %v515, 0.0
    %v531 = vadd.f32 %v529, %v530
    %v532 = vsel %vm524, %v516, 0.0
    %v533 = vadd.f32 %v531, %v532
    %v534 = vsel %vm524, %v517, 0.0
    %v535 = vadd.f32 %v533, %v534
    %v536 = vsel %vm524, %v518, 0.0
    %v537 = vadd.f32 %v535, %v536
    %v538 = vsel %vm524, %v519, 0.0
    %v539 = vadd.f32 %v537, %v538
    %v540 = vsel %vm524, %v520, 0.0
    %v541 = vadd.f32 %v539, %v540
    %v542 = vsel %vm524, %v521, 0.0
    %v543 = vadd.f32 %v541, %v542
    %v544 = vsel %vm524, %v522, 0.0
    %v545 = vadd.f32 %v543, %v544
    %v546 = vsel %vm524, %v523, 0.0
    %v547 = vadd.f32 %v545, %v546
    %548 = vadd.xlane.f32.xlu0 %v547
    %v549 = vpop.xlane.xlu0 %548
    %v550 = vrot.slane %v549, 4
    %v551 = vadd.f32 %v549, %v550
    %v552 = vrot.slane %v551, 2
    %v553 = vadd.f32 %v551, %v552
    %v554 = vrot.slane %v553, 1
    %v555 = vadd.f32 %v553, %v554
    %s556 = vtos %v555
    %v557 = vstv %s556
    %558 = vst [vmem:[#allocation2] sm:$0xff] %v557
    // Predicated region
    $region10: #{tpu_custom_call.1} parent=1 // pred_check
      _
    $region11: #{tpu_custom_call.1} parent=1 // pred_check_branch
      %560 = sbr.rel (0) target = $region13
    $region12: #{tpu_custom_call.1} parent=1 // pred_region
      %562 = vsyncadd [#allocation3], 0
      %s564 = sshll.u32 [#allocation2], 4
      %s565 = int_to_ptr.vmem [resolvable:$true] %s564
      %s566 = sshll.u32 %s2, 4
      %s567 = int_to_ptr.hbm [resolvable:$true] %s566
      %569 = dma.vmem_to_hbm [thread:$0]  %s565, 128, %s567, [#allocation3]
    $region13: #{tpu_custom_call.1} parent=1 // pred_fallthru
      _
    // Predicated region
    $region14: #{tpu_custom_call.1} parent=1 // pred_check
      _
    $region15: #{tpu_custom_call.1} parent=1 // pred_check_branch
      %571 = sbr.rel (0) target = $region17
    $region16: #{tpu_custom_call.1} parent=1 // pred_region
      %573 = dma.done [#allocation3], 128
    $region17: #{tpu_custom_call.1} parent=1 // pred_fallthru
      _
    %574 = vsyncpa [#allocation3], 1

</llo_original>
